<compile_context>
chip_gen: v5e
topology: v5e:2x2
jax: 0.10.0
libtpu: 0.0.40
codegen_flags: <defaults>
</compile_context>

<pallas_src>
import functools

import jax
import jax.numpy as jnp
from jax.experimental import pallas as pl
from jax.experimental.pallas import tpu as pltpu


def _round_up(x, m):
    return ((x + m - 1) // m) * m


def _energy_kernel(x_ref, w_ref, b_ref, o_ref, acc_ref, *, tile_k, w_resident):
    # x_ref : [TB, TK]  native activation dtype (cast in-VMEM below if needed)
    # w_ref : [TK, Cp] (tiled)  or  [Dp, Cp] (resident, one DMA for the whole grid)
    # b_ref : [1,  Cp]  f32 (padded class columns carry a large-negative bias)
    # o_ref : [1,  TB]  f32, lane-dense energies for this batch tile
    # acc   : [TB, Cp]  f32 logits accumulator, persists across the K grid axis
    k = pl.program_id(1)

    x = x_ref[...]
    if x.dtype != w_ref.dtype:
        # Per-tile cast to the (pre-cast) weight dtype; cheap VPU op hidden under DMA/MXU.
        x = x.astype(w_ref.dtype)

    if w_resident:
        off = pl.multiple_of(k * tile_k, tile_k)
        w = w_ref[pl.ds(off, tile_k), :]
    else:
        w = w_ref[...]

    part = jnp.dot(x, w, preferred_element_type=jnp.float32)   # MXU, f32 accumulate

    @pl.when(k == 0)
    def _init():                       # fold init into the first K step (no zero-store)
        acc_ref[...] = part

    @pl.when(k > 0)
    def _accum():
        acc_ref[...] += part

    @pl.when(k == pl.num_programs(1) - 1)
    def _finalize():
        logits = acc_ref[...] + b_ref[...]                     # f32 epilogue (v5e-safe)
        # Same semantics as torch.log(torch.sum(torch.exp(logits), dim=1)):
        # intentionally no max-subtraction, to match the reference bit-for-bit.
        # TODO(synk): a max-shifted logsumexp would be numerically safer for large logits.
        energy = jnp.log(jnp.sum(jnp.exp(logits), axis=1))     # (TB,)
        o_ref[...] = energy.reshape(1, -1)                     # lane-dense store


@jax.jit
def energy_model(x_nchw, w, b):
    """Energy_Model forward: log(sum(exp(x_flat @ W + b), axis=1)) -> [B].

    For the bf16 fast path, pre-cast `w` to bf16 ONCE outside this call (weights are
    reused); the kernel then casts each x tile in-VMEM and accumulates in f32.
    """
    B = x_nchw.shape[0]
    x = x_nchw.reshape(B, -1)                 # flatten NCHW -> [B, D] (free, contiguous)
    D, C = w.shape
    assert x.shape[1] == D

    x_bytes = x.dtype.itemsize
    w_bytes = w.dtype.itemsize

    # --- class (lane) padding: pad C up to a multiple of 128.  Padded weight columns
    #     are zero and padded bias entries are a large NEGATIVE value so exp() -> 0. ---
    c_pad = max(128, _round_up(C, 128))
    bias = b.astype(jnp.float32)
    if c_pad != C:
        w = jnp.pad(w, ((0, 0), (0, c_pad - C)))
        bias = jnp.pad(bias, (0, c_pad - C), constant_values=-1e30)
    b2 = bias.reshape(1, c_pad)

    # --- batch tile: single tile for small B (block == full dim, zero padding);
    #     multiple-of-128 tiles with nb >= 2 for larger B (v7x megacore split). ---
    if B <= 256:
        tile_b = B
    else:
        tile_b = min(512, _round_up(pl.cdiv(B, 2), 128))
    nb = pl.cdiv(B, tile_b)

    # --- K tile: largest multiple-of-128 divisor of D (so x needs no padding). ---
    tile_k = None
    for cand in (4096, 2048, 1024, 512, 384, 256, 128):
        if D % cand == 0:
            tile_k = cand
            break
    pad_k = tile_k is None
    if pad_k:
        tile_k = min(1024, _round_up(D, 128))
    nk = pl.cdiv(D, tile_k)
    d_pad = nk * tile_k

    # --- W residency + VMEM budget guard (v7x has 64 MiB physical VMEM). ---
    VMEM_BUDGET = 40 << 20
    w_resident = d_pad * c_pad * w_bytes <= (8 << 20)

    def vmem_need(tb, tk, resident):
        w_rows = d_pad if resident else tk
        return (2 * tb * tk * x_bytes           # x tile, double-buffered
                + 2 * w_rows * c_pad * w_bytes  # W (resident block or K tile)
                + 2 * c_pad * 4                 # bias
                + tb * c_pad * 4                # f32 logits accumulator (scratch)
                + 2 * tb * 4)                   # output row

    if w_resident and vmem_need(tile_b, tile_k, True) > VMEM_BUDGET:
        w_resident = False
    while vmem_need(tile_b, tile_k, w_resident) > VMEM_BUDGET and tile_k > 128:
        tile_k = max(128, tile_k // 2)
        if D % tile_k != 0:
            pad_k = True
        nk = pl.cdiv(D, tile_k)
        d_pad = nk * tile_k
    while (vmem_need(tile_b, tile_k, w_resident) > VMEM_BUDGET
           and tile_b > 128 and tile_b % 128 == 0):
        tile_b = max(128, tile_b // 2)
        nb = pl.cdiv(B, tile_b)
    # TODO(synk): for extremely large num_classes a C grid axis (per-C-block partial
    # logsumexp) would be preferable to shrinking the K/B tiles.

    if pad_k:
        # Fallback only when D has no multiple-of-128 divisor; costs one extra HBM pass
        # over x, avoided for all "nice" feature sizes.
        x = jnp.pad(x, ((0, 0), (0, d_pad - D)))
        w = jnp.pad(w, ((0, d_pad - D), (0, 0)))

    if w_resident:
        # Constant block index => one DMA; W stays resident for the whole grid.
        w_spec = pl.BlockSpec((d_pad, c_pad), lambda i, k: (0, 0))
    else:
        w_spec = pl.BlockSpec((tile_k, c_pad), lambda i, k: (k, 0))

    kernel = functools.partial(_energy_kernel, tile_k=tile_k, w_resident=w_resident)

    cost = pl.CostEstimate(
        flops=2 * B * d_pad * c_pad,
        transcendentals=B * c_pad + B,                       # exp + log
        bytes_accessed=(x.size * x_bytes + w.size * w_bytes + b2.size * 4 + B * 4),
    )

    vmem_limit = int(min(max(vmem_need(tile_b, tile_k, w_resident) + (6 << 20),
                             32 << 20), 48 << 20))

    out = pl.pallas_call(
        kernel,
        out_shape=jax.ShapeDtypeStruct((1, B), jnp.float32),
        grid_spec=pltpu.PrefetchScalarGridSpec(
            num_scalar_prefetch=0,
            grid=(nb, nk),                                   # batch tiles, K reduction last
            in_specs=[
                pl.BlockSpec((tile_b, tile_k), lambda i, k: (i, k)),   # x tile
                w_spec,                                                # W (resident / tiled)
                pl.BlockSpec((1, c_pad), lambda i, k: (0, 0)),         # bias
            ],
            # Same output block across K -> resident accumulator-style output row.
            out_specs=pl.BlockSpec((1, tile_b), lambda i, k: (0, i)),
            scratch_shapes=[pltpu.VMEM((tile_b, c_pad), jnp.float32)],
        ),
        compiler_params=pltpu.CompilerParams(
            dimension_semantics=("parallel", "arbitrary"),   # megacore split on v7x
            vmem_limit_bytes=vmem_limit),
        cost_estimate=cost,
    )(x, w, b2)

    return out[0]


def _ref_energy(x, w, b):
    logits = x.reshape(x.shape[0], -1) @ w + b
    return jnp.log(jnp.sum(jnp.exp(logits), axis=1))


if __name__ == "__main__":
    key = jax.random.PRNGKey(0)
    kx, kw, kb, kw2, kb2 = jax.random.split(key, 5)

    # Small shapes consistent with an NCHW conv-style input.
    B, Cin, H, W = 2, 4, 16, 16
    D = Cin * H * W          # 1024 flattened features
    num_classes = 128        # lane-aligned class dim

    x = jax.random.normal(kx, (B, Cin, H, W), dtype=jnp.float32)
    # Deterministic synthetic Linear params (fan-in scaled, like nn.Linear init).
    w = jax.random.normal(kw, (D, num_classes), dtype=jnp.float32) / jnp.sqrt(D)
    bias = jax.random.normal(kb, (num_classes,), dtype=jnp.float32) * 0.01

    # f32 path: exact semantics of the torch module.
    y = energy_model(x, w, bias)
    jax.block_until_ready(y)
    y_ref = _ref_energy(x, w, bias)
    assert y.shape == (B,)
    assert jnp.allclose(y, y_ref, atol=1e-4, rtol=1e-4), (y, y_ref)

    # bf16-weight fast path: W pre-cast ONCE outside the call; x cast per-tile in-kernel.
    w_bf16 = w.astype(jnp.bfloat16)
    y_bf16 = energy_model(x, w_bf16, bias)
    jax.block_until_ready(y_bf16)
    assert jnp.allclose(y_bf16, y_ref, atol=1.5e-1, rtol=5e-2), (y_bf16, y_ref)

    # Non-multiple-of-128 class head (exercises the C-padding / large-negative-bias path).
    C10 = 10
    w10 = jax.random.normal(kw2, (D, C10), dtype=jnp.float32) / jnp.sqrt(D)
    b10 = jax.random.normal(kb2, (C10,), dtype=jnp.float32) * 0.01
    y10 = energy_model(x, w10, b10)
    jax.block_until_ready(y10)
    y10_ref = _ref_energy(x, w10, b10)
    assert jnp.allclose(y10, y10_ref, atol=1e-4, rtol=1e-4), (y10, y10_ref)

    print("KERNEL_OK")
</pallas_src>

<mosaic_0001>
module attributes {stable_mosaic.version = 11 : i64} {
  func.func @_energy_kernel(%arg0: i32, %arg1: i32, %arg2: memref<2x1024xf32, #tpu.memory_space<vmem>>, %arg3: memref<1024x128xf32, #tpu.memory_space<vmem>>, %arg4: memref<1x128xf32, #tpu.memory_space<vmem>>, %arg5: memref<1x2xf32, #tpu.memory_space<vmem>>, %arg6: memref<2x128xf32, #tpu.memory_space<vmem>>) attributes {dimension_semantics = [#tpu.dimension_semantics<parallel>, #tpu.dimension_semantics<arbitrary>], iteration_bounds = array<i64: 1, 1>, scalar_prefetch = 0 : i64, scratch_operands = 1 : i64, tpu.core_type = #tpu.core_type<tc>, window_params = [{transform_indices = @transform_0, window_bounds = array<i64: 2, 1024>}, {pipeline_mode = #tpu.pipeline_mode<synchronous>, transform_indices = @transform_1, window_bounds = array<i64: 1024, 128>}, {pipeline_mode = #tpu.pipeline_mode<synchronous>, transform_indices = @transform_2, window_bounds = array<i64: 1, 128>}, {transform_indices = @transform_3, window_bounds = array<i64: 1, 2>}]} {
    %c0 = arith.constant 0 : index
    %c0_0 = arith.constant 0 : index
    %0 = vector.load %arg2[%c0, %c0_0] : memref<2x1024xf32, #tpu.memory_space<vmem>>, vector<2x1024xf32>
    %c1024_i32 = arith.constant 1024 : i32
    %1 = arith.muli %arg1, %c1024_i32 : i32
    %2 = tpu.assume_multiple %1, 1024 : i32
    %3 = arith.index_cast %2 : i32 to index
    %c0_1 = arith.constant 0 : index
    %4 = vector.load %arg3[%3, %c0_1] : memref<1024x128xf32, #tpu.memory_space<vmem>>, vector<1024x128xf32>
    %cst = arith.constant dense<0.000000e+00> : vector<2x128xf32>
    %5 = tpu.matmul %0, %4, %cst {dimension_numbers = #tpu.dot_dimension_numbers<[1], [0], [0], [1], [0, 0, 1, 1], [], []>} : vector<2x1024xf32>, vector<1024x128xf32>, vector<2x128xf32> -> vector<2x128xf32>
    %c0_i32 = arith.constant 0 : i32
    %6 = arith.cmpi eq, %arg1, %c0_i32 : i32
    %7 = arith.extui %6 : i1 to i32
    %c0_i32_2 = arith.constant 0 : i32
    %8 = arith.cmpi ne, %7, %c0_i32_2 : i32
    scf.if %8 {
      %c0_7 = arith.constant 0 : index
      %c0_8 = arith.constant 0 : index
      %15 = vector.load %arg6[%c0_7, %c0_8] : memref<2x128xf32, #tpu.memory_space<vmem>>, vector<2x128xf32>
      tpu.vector_store %arg6[%c0_7, %c0_8], %5 {strides = array<i32>} : memref<2x128xf32, #tpu.memory_space<vmem>>, vector<2x128xf32>,
    } else {
    }
    %c0_i32_3 = arith.constant 0 : i32
    %9 = arith.cmpi sgt, %arg1, %c0_i32_3 : i32
    %10 = arith.extui %9 : i1 to i32
    %c0_i32_4 = arith.constant 0 : i32
    %11 = arith.cmpi ne, %10, %c0_i32_4 : i32
    scf.if %11 {
      %c0_7 = arith.constant 0 : index
      %c0_8 = arith.constant 0 : index
      %15 = vector.load %arg6[%c0_7, %c0_8] : memref<2x128xf32, #tpu.memory_space<vmem>>, vector<2x128xf32>
      %16 = arith.addf %15, %5 : vector<2x128xf32>
      %c0_9 = arith.constant 0 : index
      %c0_10 = arith.constant 0 : index
      %17 = vector.load %arg6[%c0_9, %c0_10] : memref<2x128xf32, #tpu.memory_space<vmem>>, vector<2x128xf32>
      tpu.vector_store %arg6[%c0_9, %c0_10], %16 {strides = array<i32>} : memref<2x128xf32, #tpu.memory_space<vmem>>, vector<2x128xf32>,
    } else {
    }
    %c0_i32_5 = arith.constant 0 : i32
    %12 = arith.cmpi eq, %arg1, %c0_i32_5 : i32
    %13 = arith.extui %12 : i1 to i32
    %c0_i32_6 = arith.constant 0 : i32
    %14 = arith.cmpi ne, %13, %c0_i32_6 : i32
    scf.if %14 {
      %c0_7 = arith.constant 0 : index
      %c0_8 = arith.constant 0 : index
      %15 = vector.load %arg6[%c0_7, %c0_8] : memref<2x128xf32, #tpu.memory_space<vmem>>, vector<2x128xf32>
      %c0_9 = arith.constant 0 : index
      %c0_10 = arith.constant 0 : index
      %16 = vector.load %arg4[%c0_9, %c0_10] : memref<1x128xf32, #tpu.memory_space<vmem>>, vector<1x128xf32>
      %17 = vector.broadcast %16 : vector<1x128xf32> to vector<2x128xf32>
      %18 = arith.addf %15, %17 : vector<2x128xf32>
      %19 = math.exp %18 : vector<2x128xf32>
      %cst_11 = arith.constant dense<0.000000e+00> : vector<2xf32>
      %20 = vector.multi_reduction <add>, %19, %cst_11 [1] : vector<2x128xf32> to vector<2xf32>
      %21 = math.log %20 : vector<2xf32>
      %22 = vector.shape_cast %21 : vector<2xf32> to vector<1x2xf32>
      %c0_12 = arith.constant 0 : index
      %c0_13 = arith.constant 0 : index
      %23 = vector.load %arg5[%c0_12, %c0_13] : memref<1x2xf32, #tpu.memory_space<vmem>>, vector<1x2xf32>
      tpu.vector_store %arg5[%c0_12, %c0_13], %22 {strides = array<i32>} : memref<1x2xf32, #tpu.memory_space<vmem>>, vector<1x2xf32>,
    } else {
    }
    return
  }
  func.func @transform_0(%arg0: i32, %arg1: i32) -> (i32, i32) {
    %c0_i32 = arith.constant 0 : i32
    return %arg0, %arg1 : i32, i32
  }
  func.func @transform_1(%arg0: i32, %arg1: i32) -> (i32, i32) {
    %c0_i32 = arith.constant 0 : i32
    %c0_i32_0 = arith.constant 0 : i32
    %c0_i32_1 = arith.constant 0 : i32
    return %c0_i32, %c0_i32_0 : i32, i32
  }
  func.func @transform_2(%arg0: i32, %arg1: i32) -> (i32, i32) {
    %c0_i32 = arith.constant 0 : i32
    %c0_i32_0 = arith.constant 0 : i32
    %c0_i32_1 = arith.constant 0 : i32
    return %c0_i32, %c0_i32_0 : i32, i32
  }
  func.func @transform_3(%arg0: i32, %arg1: i32) -> (i32, i32) {
    %c0_i32 = arith.constant 0 : i32
    %c0_i32_0 = arith.constant 0 : i32
    return %c0_i32, %arg0 : i32, i32
  }
}

</mosaic_0001>

<llo_original>
// kernel: energy_model.1
$region0: #{energy_model.1}
  #allocation0 [shape = 'u32[]', space=smem, size = 0x4, offset = 0x4, fixed_abs, tag = 'smem constant byte address 0x4 - core index']
  #allocation1 [shape = 'u32[72,128]{1,0:T(1,128)}', space=vmem, size = 0x9000, scoped, tag = 'internal scratch']
  #allocation2 [shape = 'f32[2,128]{1,0:T(2,128)}', space=vmem, size = 0x400, scoped, tag = 'scratch operand']
  %s0 = inlined_call_operand.vmem [shape: f32[2,1024], index: 0, kind: input, shape index: {}]
  %s1 = inlined_call_operand.hbm [shape: f32[1024,128], index: 1, kind: input, shape index: {}]
  %s2 = inlined_call_operand.vmem [shape: f32[1,128], index: 2, kind: input, shape index: {}]
  %s3 = inlined_call_operand.hbm [shape: f32[1,2], index: 3, kind: output, shape index: {}]
  %s4 = sld [smem:[#allocation0]]
  $region38: #{energy_model.1} parent=0
    _
  %s6 = ssub.s32 1, %s4
  %s7 = scalar_select 0, %s6, %s4
  $region1: #{energy_model.1} parent=0
    #allocation3 [shape = 'u8[524288]{0}', space=vmem, size = 0x80000, scoped, tag = 'input window, operand 1, single buffered']
    #allocation4 [shape = 's32[1]{0}', space=sflag, size = 0x4, scoped, tag = 'scoped memory for energy_model.1']
    #allocation5 [shape = 's32[1]{0}', space=sflag, size = 0x4, scoped, tag = 'scoped memory for energy_model.1']
    #allocation6 [shape = 'u8[512]{0}', space=vmem, size = 0x400, scoped, tag = 'output window, operand 0, single buffered']
    %8 = vsyncpa [#allocation4], 0
    %9 = vsyncpa [#allocation5], 0
    // Predicated region
    $region2: #{energy_model.1} parent=1 // pred_check
      _
    $region3: #{energy_model.1} parent=1 // pred_check_branch
      %11 = sbr.rel (0) target = $region5
    $region4: #{energy_model.1} parent=1 // pred_region
      _
    $region5: #{energy_model.1} parent=1 // pred_fallthru
      _
    // Predicated region
    $region6: #{energy_model.1} parent=1 // pred_check
      _
    $region7: #{energy_model.1} parent=1 // pred_check_branch
      %13 = sbr.rel (0) target = $region9
    $region8: #{energy_model.1} parent=1 // pred_region
      %15 = vsyncadd [#allocation4], 0
      %s16 = sshll.u32 %s1, 4
      %s17 = int_to_ptr.hbm [resolvable:$true] %s16
      %s18 = sshll.u32 [#allocation3], 4
      %s19 = int_to_ptr.vmem [resolvable:$true] %s18
      %24 = dma.hbm_to_vmem [thread:$0]  %s17, 16384, %s19, [#allocation4], 128, 128, 8
    $region9: #{energy_model.1} parent=1 // pred_fallthru
      _
    // Predicated region
    $region10: #{energy_model.1} parent=1 // pred_check
      _
    $region11: #{energy_model.1} parent=1 // pred_check_branch
      %26 = sbr.rel (0) target = $region13
    $region12: #{energy_model.1} parent=1 // pred_region
      _
    $region13: #{energy_model.1} parent=1 // pred_fallthru
      _
    // Predicated region
    $region14: #{energy_model.1} parent=1 // pred_check
      _
    $region15: #{energy_model.1} parent=1 // pred_check_branch
      %28 = sbr.rel (0) target = $region17
    $region16: #{energy_model.1} parent=1 // pred_region
      %30 = dma.done [#allocation4], 16384
    $region17: #{energy_model.1} parent=1 // pred_fallthru
      _
    %v31 = vld [vmem:[%s0] sm:$0xff]
    %v32 = vld [vmem:[%s0 + $0x8] sm:$0xff]
    %s33 = smul.u32 0, 1024
    %s34 = scalar_lea.vmem [#allocation3], %s33
    %v35 = vld [vmem:[%s34] sm:$0xff]
    %v36 = vld [vmem:[%s34 + $0x8] sm:$0xff]
    %v37 = vld [vmem:[%s34 + $0x10] sm:$0xff]
    %v38 = vld [vmem:[%s34 + $0x18] sm:$0xff]
    %v39 = vld [vmem:[%s34 + $0x20] sm:$0xff]
    %v40 = vld [vmem:[%s34 + $0x28] sm:$0xff]
    %v41 = vld [vmem:[%s34 + $0x30] sm:$0xff]
    %v42 = vld [vmem:[%s34 + $0x38] sm:$0xff]
    %v43 = vld [vmem:[%s34 + $0x40] sm:$0xff]
    %v44 = vld [vmem:[%s34 + $0x48] sm:$0xff]
    %v45 = vld [vmem:[%s34 + $0x50] sm:$0xff]
    %v46 = vld [vmem:[%s34 + $0x58] sm:$0xff]
    %v47 = vld [vmem:[%s34 + $0x60] sm:$0xff]
    %v48 = vld [vmem:[%s34 + $0x68] sm:$0xff]
    %v49 = vld [vmem:[%s34 + $0x70] sm:$0xff]
    %v50 = vld [vmem:[%s34 + $0x78] sm:$0xff]
    %v51 = vld [vmem:[%s34 + $0x80] sm:$0xff]
    %v52 = vld [vmem:[%s34 + $0x88] sm:$0xff]
    %v53 = vld [vmem:[%s34 + $0x90] sm:$0xff]
    %v54 = vld [vmem:[%s34 + $0x98] sm:$0xff]
    %v55 = vld [vmem:[%s34 + $0xa0] sm:$0xff]
    %v56 = vld [vmem:[%s34 + $0xa8] sm:$0xff]
    %v57 = vld [vmem:[%s34 + $0xb0] sm:$0xff]
    %v58 = vld [vmem:[%s34 + $0xb8] sm:$0xff]
    %v59 = vld [vmem:[%s34 + $0xc0] sm:$0xff]
    %v60 = vld [vmem:[%s34 + $0xc8] sm:$0xff]
    %v61 = vld [vmem:[%s34 + $0xd0] sm:$0xff]
    %v62 = vld [vmem:[%s34 + $0xd8] sm:$0xff]
    %v63 = vld [vmem:[%s34 + $0xe0] sm:$0xff]
    %v64 = vld [vmem:[%s34 + $0xe8] sm:$0xff]
    %v65 = vld [vmem:[%s34 + $0xf0] sm:$0xff]
    %v66 = vld [vmem:[%s34 + $0xf8] sm:$0xff]
    %v67 = vld [vmem:[%s34 + $0x100] sm:$0xff]
    %v68 = vld [vmem:[%s34 + $0x108] sm:$0xff]
    %v69 = vld [vmem:[%s34 + $0x110] sm:$0xff]
    %v70 = vld [vmem:[%s34 + $0x118] sm:$0xff]
    %v71 = vld [vmem:[%s34 + $0x120] sm:$0xff]
    %v72 = vld [vmem:[%s34 + $0x128] sm:$0xff]
    %v73 = vld [vmem:[%s34 + $0x130] sm:$0xff]
    %v74 = vld [vmem:[%s34 + $0x138] sm:$0xff]
    %v75 = vld [vmem:[%s34 + $0x140] sm:$0xff]
    %v76 = vld [vmem:[%s34 + $0x148] sm:$0xff]
    %v77 = vld [vmem:[%s34 + $0x150] sm:$0xff]
    %v78 = vld [vmem:[%s34 + $0x158] sm:$0xff]
    %v79 = vld [vmem:[%s34 + $0x160] sm:$0xff]
    %v80 = vld [vmem:[%s34 + $0x168] sm:$0xff]
    %v81 = vld [vmem:[%s34 + $0x170] sm:$0xff]
    %v82 = vld [vmem:[%s34 + $0x178] sm:$0xff]
    %v83 = vld [vmem:[%s34 + $0x180] sm:$0xff]
    %v84 = vld [vmem:[%s34 + $0x188] sm:$0xff]
    %v85 = vld [vmem:[%s34 + $0x190] sm:$0xff]
    %v86 = vld [vmem:[%s34 + $0x198] sm:$0xff]
    %v87 = vld [vmem:[%s34 + $0x1a0] sm:$0xff]
    %v88 = vld [vmem:[%s34 + $0x1a8] sm:$0xff]
    %v89 = vld [vmem:[%s34 + $0x1b0] sm:$0xff]
    %v90 = vld [vmem:[%s34 + $0x1b8] sm:$0xff]
    %v91 = vld [vmem:[%s34 + $0x1c0] sm:$0xff]
    %v92 = vld [vmem:[%s34 + $0x1c8] sm:$0xff]
    %v93 = vld [vmem:[%s34 + $0x1d0] sm:$0xff]
    %v94 = vld [vmem:[%s34 + $0x1d8] sm:$0xff]
    %v95 = vld [vmem:[%s34 + $0x1e0] sm:$0xff]
    %v96 = vld [vmem:[%s34 + $0x1e8] sm:$0xff]
    %v97 = vld [vmem:[%s34 + $0x1f0] sm:$0xff]
    %v98 = vld [vmem:[%s34 + $0x1f8] sm:$0xff]
    %v99 = vld [vmem:[%s34 + $0x200] sm:$0xff]
    %v100 = vld [vmem:[%s34 + $0x208] sm:$0xff]
    %v101 = vld [vmem:[%s34 + $0x210] sm:$0xff]
    %v102 = vld [vmem:[%s34 + $0x218] sm:$0xff]
    %v103 = vld [vmem:[%s34 + $0x220] sm:$0xff]
    %v104 = vld [vmem:[%s34 + $0x228] sm:$0xff]
    %v105 = vld [vmem:[%s34 + $0x230] sm:$0xff]
    %v106 = vld [vmem:[%s34 + $0x238] sm:$0xff]
    %v107 = vld [vmem:[%s34 + $0x240] sm:$0xff]
    %v108 = vld [vmem:[%s34 + $0x248] sm:$0xff]
    %v109 = vld [vmem:[%s34 + $0x250] sm:$0xff]
    %v110 = vld [vmem:[%s34 + $0x258] sm:$0xff]
    %v111 = vld [vmem:[%s34 + $0x260] sm:$0xff]
    %v112 = vld [vmem:[%s34 + $0x268] sm:$0xff]
    %v113 = vld [vmem:[%s34 + $0x270] sm:$0xff]
    %v114 = vld [vmem:[%s34 + $0x278] sm:$0xff]
    %v115 = vld [vmem:[%s34 + $0x280] sm:$0xff]
    %v116 = vld [vmem:[%s34 + $0x288] sm:$0xff]
    %v117 = vld [vmem:[%s34 + $0x290] sm:$0xff]
    %v118 = vld [vmem:[%s34 + $0x298] sm:$0xff]
    %v119 = vld [vmem:[%s34 + $0x2a0] sm:$0xff]
    %v120 = vld [vmem:[%s34 + $0x2a8] sm:$0xff]
    %v121 = vld [vmem:[%s34 + $0x2b0] sm:$0xff]
    %v122 = vld [vmem:[%s34 + $0x2b8] sm:$0xff]
    %v123 = vld [vmem:[%s34 + $0x2c0] sm:$0xff]
    %v124 = vld [vmem:[%s34 + $0x2c8] sm:$0xff]
    %v125 = vld [vmem:[%s34 + $0x2d0] sm:$0xff]
    %v126 = vld [vmem:[%s34 + $0x2d8] sm:$0xff]
    %v127 = vld [vmem:[%s34 + $0x2e0] sm:$0xff]
    %v128 = vld [vmem:[%s34 + $0x2e8] sm:$0xff]
    %v129 = vld [vmem:[%s34 + $0x2f0] sm:$0xff]
    %v130 = vld [vmem:[%s34 + $0x2f8] sm:$0xff]
    %v131 = vld [vmem:[%s34 + $0x300] sm:$0xff]
    %v132 = vld [vmem:[%s34 + $0x308] sm:$0xff]
    %v133 = vld [vmem:[%s34 + $0x310] sm:$0xff]
    %v134 = vld [vmem:[%s34 + $0x318] sm:$0xff]
    %v135 = vld [vmem:[%s34 + $0x320] sm:$0xff]
    %v136 = vld [vmem:[%s34 + $0x328] sm:$0xff]
    %v137 = vld [vmem:[%s34 + $0x330] sm:$0xff]
    %v138 = vld [vmem:[%s34 + $0x338] sm:$0xff]
    %v139 = vld [vmem:[%s34 + $0x340] sm:$0xff]
    %v140 = vld [vmem:[%s34 + $0x348] sm:$0xff]
    %v141 = vld [vmem:[%s34 + $0x350] sm:$0xff]
    %v142 = vld [vmem:[%s34 + $0x358] sm:$0xff]
    %v143 = vld [vmem:[%s34 + $0x360] sm:$0xff]
    %v144 = vld [vmem:[%s34 + $0x368] sm:$0xff]
    %v145 = vld [vmem:[%s34 + $0x370] sm:$0xff]
    %v146 = vld [vmem:[%s34 + $0x378] sm:$0xff]
    %v147 = vld [vmem:[%s34 + $0x380] sm:$0xff]
    %v148 = vld [vmem:[%s34 + $0x388] sm:$0xff]
    %v149 = vld [vmem:[%s34 + $0x390] sm:$0xff]
    %v150 = vld [vmem:[%s34 + $0x398] sm:$0xff]
    %v151 = vld [vmem:[%s34 + $0x3a0] sm:$0xff]
    %v152 = vld [vmem:[%s34 + $0x3a8] sm:$0xff]
    %v153 = vld [vmem:[%s34 + $0x3b0] sm:$0xff]
    %v154 = vld [vmem:[%s34 + $0x3b8] sm:$0xff]
    %v155 = vld [vmem:[%s34 + $0x3c0] sm:$0xff]
    %v156 = vld [vmem:[%s34 + $0x3c8] sm:$0xff]
    %v157 = vld [vmem:[%s34 + $0x3d0] sm:$0xff]
    %v158 = vld [vmem:[%s34 + $0x3d8] sm:$0xff]
    %v159 = vld [vmem:[%s34 + $0x3e0] sm:$0xff]
    %v160 = vld [vmem:[%s34 + $0x3e8] sm:$0xff]
    %v161 = vld [vmem:[%s34 + $0x3f0] sm:$0xff]
    %v162 = vld [vmem:[%s34 + $0x3f8] sm:$0xff]
    %165 = vst [vmem:[#allocation1] ss:$4 sm:$0xff] %v31
    %s166 = scalar_lea.vmem [#allocation1], 32
    %167 = vst [vmem:[%s166] ss:$4 sm:$0xff] %v32
    %v168 = vld.sshfl [vmem:[#allocation1] sm:$0xff pattern:$0x73625140]
    %v169 = vld.sshfl [vmem:[#allocation1 + $0x8] sm:$0xff pattern:$0x73625140]
    %v170 = vld.sshfl [vmem:[#allocation1 + $0x10] sm:$0xff pattern:$0x73625140]
    %v171 = vld.sshfl [vmem:[#allocation1 + $0x18] sm:$0xff pattern:$0x73625140]
    %v172 = vld.sshfl [vmem:[#allocation1 + $0x20] sm:$0xff pattern:$0x73625140]
    %v173 = vld.sshfl [vmem:[#allocation1 + $0x28] sm:$0xff pattern:$0x73625140]
    %v174 = vld.sshfl [vmem:[#allocation1 + $0x30] sm:$0xff pattern:$0x73625140]
    %v175 = vld.sshfl [vmem:[#allocation1 + $0x38] sm:$0xff pattern:$0x73625140]
    %184 = vmatpush.msra.mxu0 %v50
    %185 = vmatpush.msra.mxu0 %v49
    %186 = vmatpush.msra.mxu0 %v48
    %187 = vmatpush.msra.mxu0 %v47
    %188 = vmatpush.msra.mxu0 %v46
    %189 = vmatpush.msra.mxu0 %v45
    %190 = vmatpush.msra.mxu0 %v44
    %191 = vmatpush.msra.mxu0 %v43
    %192 = vmatpush.msra.mxu0 %v42
    %193 = vmatpush.msra.mxu0 %v41
    %194 = vmatpush.msra.mxu0 %v40
    %195 = vmatpush.msra.mxu0 %v39
    %196 = vmatpush.msra.mxu0 %v38
    %197 = vmatpush.msra.mxu0 %v37
    %198 = vmatpush.msra.mxu0 %v36
    %199 = vmatpush.msra.mxu0 %v35
    %200 = vmatmul.f32.gmra.mxu0 %v168
    %v201 = vpop.f32.mrf.mxu0
    %v202 = vadd.f32 0.0, %v201
    %203 = vdwg.mxu0
    %204 = vmatpush.msra.mxu0 %v66
    %205 = vmatpush.msra.mxu0 %v65
    %206 = vmatpush.msra.mxu0 %v64
    %207 = vmatpush.msra.mxu0 %v63
    %208 = vmatpush.msra.mxu0 %v62
    %209 = vmatpush.msra.mxu0 %v61
    %210 = vmatpush.msra.mxu0 %v60
    %211 = vmatpush.msra.mxu0 %v59
    %212 = vmatpush.msra.mxu0 %v58
    %213 = vmatpush.msra.mxu0 %v57
    %214 = vmatpush.msra.mxu0 %v56
    %215 = vmatpush.msra.mxu0 %v55
    %216 = vmatpush.msra.mxu0 %v54
    %217 = vmatpush.msra.mxu0 %v53
    %218 = vmatpush.msra.mxu0 %v52
    %219 = vmatpush.msra.mxu0 %v51
    %220 = vmatmul.f32.gmra.mxu0 %v169
    %v221 = vpop.f32.mrf.mxu0
    %v222 = vadd.f32 %v202, %v221
    %223 = vdwg.mxu0
    %224 = vmatpush.msra.mxu0 %v82
    %225 = vmatpush.msra.mxu0 %v81
    %226 = vmatpush.msra.mxu0 %v80
    %227 = vmatpush.msra.mxu0 %v79
    %228 = vmatpush.msra.mxu0 %v78
    %229 = vmatpush.msra.mxu0 %v77
    %230 = vmatpush.msra.mxu0 %v76
    %231 = vmatpush.msra.mxu0 %v75
    %232 = vmatpush.msra.mxu0 %v74
    %233 = vmatpush.msra.mxu0 %v73
    %234 = vmatpush.msra.mxu0 %v72
    %235 = vmatpush.msra.mxu0 %v71
    %236 = vmatpush.msra.mxu0 %v70
    %237 = vmatpush.msra.mxu0 %v69
    %238 = vmatpush.msra.mxu0 %v68
    %239 = vmatpush.msra.mxu0 %v67
    %240 = vmatmul.f32.gmra.mxu0 %v170
    %v241 = vpop.f32.mrf.mxu0
    %v242 = vadd.f32 %v222, %v241
    %243 = vdwg.mxu0
    %244 = vmatpush.msra.mxu0 %v98
    %245 = vmatpush.msra.mxu0 %v97
    %246 = vmatpush.msra.mxu0 %v96
    %247 = vmatpush.msra.mxu0 %v95
    %248 = vmatpush.msra.mxu0 %v94
    %249 = vmatpush.msra.mxu0 %v93
    %250 = vmatpush.msra.mxu0 %v92
    %251 = vmatpush.msra.mxu0 %v91
    %252 = vmatpush.msra.mxu0 %v90
    %253 = vmatpush.msra.mxu0 %v89
    %254 = vmatpush.msra.mxu0 %v88
    %255 = vmatpush.msra.mxu0 %v87
    %256 = vmatpush.msra.mxu0 %v86
    %257 = vmatpush.msra.mxu0 %v85
    %258 = vmatpush.msra.mxu0 %v84
    %259 = vmatpush.msra.mxu0 %v83
    %260 = vmatmul.f32.gmra.mxu0 %v171
    %v261 = vpop.f32.mrf.mxu0
    %v262 = vadd.f32 %v242, %v261
    %263 = vdwg.mxu0
    %264 = vmatpush.msra.mxu0 %v114
    %265 = vmatpush.msra.mxu0 %v113
    %266 = vmatpush.msra.mxu0 %v112
    %267 = vmatpush.msra.mxu0 %v111
    %268 = vmatpush.msra.mxu0 %v110
    %269 = vmatpush.msra.mxu0 %v109
    %270 = vmatpush.msra.mxu0 %v108
    %271 = vmatpush.msra.mxu0 %v107
    %272 = vmatpush.msra.mxu0 %v106
    %273 = vmatpush.msra.mxu0 %v105
    %274 = vmatpush.msra.mxu0 %v104
    %275 = vmatpush.msra.mxu0 %v103
    %276 = vmatpush.msra.mxu0 %v102
    %277 = vmatpush.msra.mxu0 %v101
    %278 = vmatpush.msra.mxu0 %v100
    %279 = vmatpush.msra.mxu0 %v99
    %280 = vmatmul.f32.gmra.mxu0 %v172
    %v281 = vpop.f32.mrf.mxu0
    %v282 = vadd.f32 %v262, %v281
    %283 = vdwg.mxu0
    %284 = vmatpush.msra.mxu0 %v130
    %285 = vmatpush.msra.mxu0 %v129
    %286 = vmatpush.msra.mxu0 %v128
    %287 = vmatpush.msra.mxu0 %v127
    %288 = vmatpush.msra.mxu0 %v126
    %289 = vmatpush.msra.mxu0 %v125
    %290 = vmatpush.msra.mxu0 %v124
    %291 = vmatpush.msra.mxu0 %v123
    %292 = vmatpush.msra.mxu0 %v122
    %293 = vmatpush.msra.mxu0 %v121
    %294 = vmatpush.msra.mxu0 %v120
    %295 = vmatpush.msra.mxu0 %v119
    %296 = vmatpush.msra.mxu0 %v118
    %297 = vmatpush.msra.mxu0 %v117
    %298 = vmatpush.msra.mxu0 %v116
    %299 = vmatpush.msra.mxu0 %v115
    %300 = vmatmul.f32.gmra.mxu0 %v173
    %v301 = vpop.f32.mrf.mxu0
    %v302 = vadd.f32 %v282, %v301
    %303 = vdwg.mxu0
    %304 = vmatpush.msra.mxu0 %v146
    %305 = vmatpush.msra.mxu0 %v145
    %306 = vmatpush.msra.mxu0 %v144
    %307 = vmatpush.msra.mxu0 %v143
    %308 = vmatpush.msra.mxu0 %v142
    %309 = vmatpush.msra.mxu0 %v141
    %310 = vmatpush.msra.mxu0 %v140
    %311 = vmatpush.msra.mxu0 %v139
    %312 = vmatpush.msra.mxu0 %v138
    %313 = vmatpush.msra.mxu0 %v137
    %314 = vmatpush.msra.mxu0 %v136
    %315 = vmatpush.msra.mxu0 %v135
    %316 = vmatpush.msra.mxu0 %v134
    %317 = vmatpush.msra.mxu0 %v133
    %318 = vmatpush.msra.mxu0 %v132
    %319 = vmatpush.msra.mxu0 %v131
    %320 = vmatmul.f32.gmra.mxu0 %v174
    %v321 = vpop.f32.mrf.mxu0
    %v322 = vadd.f32 %v302, %v321
    %323 = vdwg.mxu0
    %324 = vmatpush.msra.mxu0 %v162
    %325 = vmatpush.msra.mxu0 %v161
    %326 = vmatpush.msra.mxu0 %v160
    %327 = vmatpush.msra.mxu0 %v159
    %328 = vmatpush.msra.mxu0 %v158
    %329 = vmatpush.msra.mxu0 %v157
    %330 = vmatpush.msra.mxu0 %v156
    %331 = vmatpush.msra.mxu0 %v155
    %332 = vmatpush.msra.mxu0 %v154
    %333 = vmatpush.msra.mxu0 %v153
    %334 = vmatpush.msra.mxu0 %v152
    %335 = vmatpush.msra.mxu0 %v151
    %336 = vmatpush.msra.mxu0 %v150
    %337 = vmatpush.msra.mxu0 %v149
    %338 = vmatpush.msra.mxu0 %v148
    %339 = vmatpush.msra.mxu0 %v147
    %340 = vmatmul.f32.gmra.mxu0 %v175
    %v341 = vpop.f32.mrf.mxu0
    %v342 = vadd.f32 %v322, %v341
    %343 = vdwg.mxu0
    %p344 = scmp.eq.s32.totalorder 0, 0
    // Predicated region
    $region18: #{energy_model.1} parent=1 // pred_check
      %p345 = pneg %p344
    $region19: #{energy_model.1} parent=1 // pred_check_branch
      %347 = sbr.rel (%p345) target = $region21
    $region20: #{energy_model.1} parent=1 // pred_region
      %348 = vst [vmem:[#allocation2] sm:$0x3] %v342
    $region21: #{energy_model.1} parent=1 // pred_fallthru
      _
    %p349 = scmp.gt.s32.totalorder 0, 0
    // Predicated region
    $region22: #{energy_model.1} parent=1 // pred_check
      %p350 = pneg %p349
    $region23: #{energy_model.1} parent=1 // pred_check_branch
      %352 = sbr.rel (%p350) target = $region25
    $region24: #{energy_model.1} parent=1 // pred_region
      %v353 = vld [vmem:[#allocation2] sm:$0x3]
      %v354 = vadd.f32 %v353, %v342
      %355 = vst [vmem:[#allocation2] sm:$0x3] %v354
    $region25: #{energy_model.1} parent=1 // pred_fallthru
      _
    // Predicated region
    $region26: #{energy_model.1} parent=1 // pred_check
      %p356 = pneg %p344
    $region27: #{energy_model.1} parent=1 // pred_check_branch
      %358 = sbr.rel (%p356) target = $region29
    $region28: #{energy_model.1} parent=1 // pred_region
      %v359 = vld [vmem:[#allocation2] sm:$0x3]
      %v360 = vld [vmem:[%s2] sm:$0x1]
      %v362 = vperm.slane %v360, 0
      %v364 = vadd.f32 %v359, %v362
      %v365 = vmul.f32 %v364, 1.442695
      %v366 = vpow.pop %v365
      %vm367 = vcmask 1041408
      %v368 = vsel %vm367, %v366, 0.0
      %369 = vadd.xlane.f32.xlu0 %v368
      %v370 = vpop.xlane.xlu0 %369
      %v371 = vlog2.pop %v370
      %v372 = vmul.f32 %v371, 0.6931472
      %v374 = vlaneseq
      %v375 = vand.u32 %v374, 127
      %v376 = vperm.slane %v372, %v375
      %vm378 = vcmask 8192
      %379 = vst.msk [vmem:[#allocation6] sm:$0x1] %vm378, %v376
    $region29: #{energy_model.1} parent=1 // pred_fallthru
      _
    // Predicated region
    $region30: #{energy_model.1} parent=1 // pred_check
      _
    $region31: #{energy_model.1} parent=1 // pred_check_branch
      %381 = sbr.rel (0) target = $region33
    $region32: #{energy_model.1} parent=1 // pred_region
      %383 = vsyncadd [#allocation5], 0
      %s385 = sshll.u32 [#allocation6], 4
      %s386 = int_to_ptr.vmem [resolvable:$true] %s385
      %s387 = sshll.u32 %s3, 4
      %s388 = int_to_ptr.hbm [resolvable:$true] %s387
      %390 = dma.vmem_to_hbm [thread:$0]  %s386, 16, %s388, [#allocation5]
    $region33: #{energy_model.1} parent=1 // pred_fallthru
      _
    // Predicated region
    $region34: #{energy_model.1} parent=1 // pred_check
      _
    $region35: #{energy_model.1} parent=1 // pred_check_branch
      %392 = sbr.rel (0) target = $region37
    $region36: #{energy_model.1} parent=1 // pred_region
      %394 = dma.done [#allocation5], 16
    $region37: #{energy_model.1} parent=1 // pred_fallthru
      _
    %395 = vsyncpa [#allocation4], 1
    %396 = vsyncpa [#allocation5], 1

</llo_original>
